<compile_context>
chip_gen: v7x
topology: tpu7x:2x2x1
jax: 0.10.0
libtpu: 0.0.40
codegen_flags: <defaults>
</compile_context>

<pallas_src>
import jax
import jax.numpy as jnp
from jax import lax
from jax.experimental import pallas as pl
from jax.experimental.pallas import tpu as pltpu


_ONE_HOT_MAX_V = 2048                 # one-hot MXU path threshold
_MAX_TOKENS_PER_HBM_CALL = 1 << 18    # SMEM 1D int32 padding limit for prefetched ids


def _round_up(x: int, m: int) -> int:
    return ((x + m - 1) // m) * m


def _vmem_capacity_bytes() -> int:
    """Per-core VMEM capacity; conservative fallback if the query is unavailable."""
    try:
        return int(pltpu.get_tpu_info().vmem_capacity_bytes)
    except Exception:
        return 64 << 20   # v7x per-TensorCore VMEM — safe lower bound for all gens


def _fits_resident(num_embeddings: int, embedding_dim: int, itemsize: int) -> bool:
    table_bytes = num_embeddings * embedding_dim * itemsize
    # Worst case: the constant-index table block is double-buffered.  Leave
    # ~12 MiB headroom for pipelined out/id buffers + compiler internal scratch.
    return 2 * table_bytes + (12 << 20) <= _vmem_capacity_bytes()


def _choose_tok(n: int, out_row_bytes: int, onehot_row_bytes: int = 0,
                cap: int = 2048) -> int:
    """D-aware token tile: ~1 MiB per output buffer, one-hot intermediate <= 4 MiB."""
    tok = (1 << 20) // max(1, out_row_bytes)
    if onehot_row_bytes:
        tok = min(tok, (4 << 20) // max(1, onehot_row_bytes))
    tok = max(32, min(cap, tok))
    tok = min(tok, _round_up(n, 32))
    return _round_up(tok, 32)


# ---------------------------------------------------------------------------
# Kernels
# ---------------------------------------------------------------------------

def _embedding_onehot_kernel(ids_ref, w_ref, out_ref):
    """Small-V path: one-hot (TOK, V) built on VPU, row-select via MXU matmul.

    Exact: each output element is a single 1.0 * w[id, d] product accumulated
    in f32, so results match a direct gather bit-for-bit.
    """
    tok, _ = out_ref.shape
    v = w_ref.shape[0]
    ids = ids_ref[...]                                           # (tok, 1) int32
    cols = lax.broadcasted_iota(jnp.int32, (tok, v), 1)          # (tok, V)
    one_hot = (cols == ids).astype(w_ref.dtype)                  # lane-broadcast cmp
    out_ref[...] = jnp.dot(one_hot, w_ref[...],
                           preferred_element_type=jnp.float32).astype(out_ref.dtype)


def _embedding_take_kernel(ids_ref, w_ref, out_ref):
    """Medium-table path: whole (V, D) table resident in VMEM, vectorized gather."""
    tok = out_ref.shape[0]
    ids = ids_ref[...].reshape(tok)                              # (tok,) int32
    out_ref[...] = jnp.take(w_ref[...], ids, axis=0,
                            indices_are_sorted=False,
                            unique_indices=False).astype(out_ref.dtype)


def _embedding_hbm_kernel(ids_ref, w_hbm_ref, out_ref, copy_sem):
    """Large-table path: per-row DMA from HBM straight into the output tile."""
    tok = out_ref.shape[0]
    base = pl.program_id(0) * tok

    # Issue all row copies (kept in flight), all signaling one DMA semaphore.
    def issue(r, carry):
        row = ids_ref[base + r]
        pltpu.make_async_copy(w_hbm_ref.at[row], out_ref.at[r], copy_sem).start()
        return carry

    lax.fori_loop(0, tok, issue, 0, unroll=8)

    # Single drain: DMA semaphores count bytes, and the tok row copies above sum
    # to exactly this descriptor's transfer size, so one wait replaces tok waits
    # (and avoids breaking SMEM sst->sld forwarding tok times).
    pltpu.make_async_copy(out_ref, out_ref, copy_sem).wait()

    # TODO(synk): optional dedup/coalescing of repeated ids within a tile to cut
    # the DMA-descriptor count further on skewed token distributions.


# ---------------------------------------------------------------------------
# Wrappers
# ---------------------------------------------------------------------------

def _resident_gather(flat_ids: jax.Array, weight: jax.Array) -> jax.Array:
    """Table resident in VMEM: one-hot MXU (small V) or vectorized take."""
    (n,) = flat_ids.shape
    v, d = weight.shape
    itemsize = jnp.dtype(weight.dtype).itemsize

    use_onehot = v <= _ONE_HOT_MAX_V
    tok = _choose_tok(n, d * itemsize,
                      onehot_row_bytes=(v * itemsize if use_onehot else 0))
    n_pad = _round_up(n, tok)
    if n_pad != n:
        flat_ids = jnp.pad(flat_ids, (0, n_pad - n))   # pad with row 0 (discarded)
    ids2d = flat_ids.reshape(n_pad, 1)
    n_tiles = n_pad // tok

    table_spec = pl.BlockSpec((v, d), lambda i: (0, 0))
    if not use_onehot:
        # Constant-index table block is only DMA'd once; request single buffering
        # so a large resident table does not reserve 2x its size in VMEM.
        try:
            table_spec = pl.BlockSpec((v, d), lambda i: (0, 0),
                                      pipeline_mode=pl.Buffered(1))
        except Exception:
            pass  # older API: fall back to default buffering (budgeted for below)

    table_bytes = v * d * itemsize
    vmem_need = (2 * table_bytes                      # worst case: double-buffered
                 + 2 * tok * d * itemsize             # pipelined output buffers
                 + 2 * tok * 4                        # pipelined id buffers
                 + (tok * v * itemsize if use_onehot else 0))
    cap = _vmem_capacity_bytes()
    vmem_limit = int(min(max(vmem_need + (8 << 20), 32 << 20), cap - (8 << 20)))

    kernel = _embedding_onehot_kernel if use_onehot else _embedding_take_kernel
    flops = 2 * n_pad * v * d if use_onehot else 0

    out = pl.pallas_call(
        kernel,
        out_shape=jax.ShapeDtypeStruct((n_pad, d), weight.dtype),
        grid_spec=pltpu.PrefetchScalarGridSpec(
            num_scalar_prefetch=0,
            grid=(n_tiles,),
            in_specs=[pl.BlockSpec((tok, 1), lambda i: (i, 0)),   # ids (VMEM block)
                      table_spec],                                 # resident table
            out_specs=pl.BlockSpec((tok, d), lambda i: (i, 0)),
        ),
        compiler_params=pltpu.CompilerParams(
            dimension_semantics=("parallel",),   # disjoint output tiles
            vmem_limit_bytes=vmem_limit,
        ),
        cost_estimate=pl.CostEstimate(
            flops=flops, transcendentals=0,
            bytes_accessed=int(n_pad * d * itemsize + table_bytes + n_pad * 4)),
    )(ids2d, weight)

    return out[:n] if n_pad != n else out


def _hbm_gather(flat_ids: jax.Array, weight: jax.Array) -> jax.Array:
    """Large-table path: weight stays in HBM, per-row DMA into the output tile."""
    (n,) = flat_ids.shape
    v, d = weight.shape
    itemsize = jnp.dtype(weight.dtype).itemsize

    # Moderate tile: bounds the number of in-flight row DMAs per grid step.
    tok = min(_choose_tok(n, d * itemsize), 512)
    n_pad = _round_up(n, tok)
    if n_pad != n:
        flat_ids = jnp.pad(flat_ids, (0, n_pad - n))
    n_tiles = n_pad // tok

    cap = _vmem_capacity_bytes()
    vmem_need = 4 * tok * d * itemsize
    vmem_limit = int(min(max(vmem_need + (8 << 20), 32 << 20), cap - (8 << 20)))

    out = pl.pallas_call(
        _embedding_hbm_kernel,
        out_shape=jax.ShapeDtypeStruct((n_pad, d), weight.dtype),
        grid_spec=pltpu.PrefetchScalarGridSpec(
            num_scalar_prefetch=1,                          # ids -> SMEM scalars
            grid=(n_tiles,),
            in_specs=[pl.BlockSpec(memory_space=pl.ANY)],   # weight stays in HBM
            out_specs=pl.BlockSpec((tok, d), lambda i, ids: (i, 0)),
            scratch_shapes=[pltpu.SemaphoreType.DMA(())],
        ),
        compiler_params=pltpu.CompilerParams(
            dimension_semantics=("parallel",),
            vmem_limit_bytes=vmem_limit,
        ),
        cost_estimate=pl.CostEstimate(
            flops=0, transcendentals=0,
            bytes_accessed=int(2 * n_pad * d * itemsize + n_pad * 4)),
    )(flat_ids, weight)

    return out[:n] if n_pad != n else out


def embedding_forward(token_ids: jax.Array, weight: jax.Array, *,
                      force_hbm_path: bool = False) -> jax.Array:
    """Pallas equivalent of `weight[token_ids]` (nn.Embedding.forward).

    Args:
      token_ids: (B, T) integer indices in [0, V).
      weight:    (V, D) embedding table.

    Returns:
      (B, T, D) gathered embeddings, same dtype as `weight`.
    """
    b, t = token_ids.shape
    v, d = weight.shape
    itemsize = jnp.dtype(weight.dtype).itemsize

    flat_ids = jnp.clip(token_ids.reshape(-1).astype(jnp.int32), 0, v - 1)
    n = flat_ids.shape[0]

    if (not force_hbm_path) and _fits_resident(v, d, itemsize):
        out_flat = _resident_gather(flat_ids, weight)
    elif n <= _MAX_TOKENS_PER_HBM_CALL:
        out_flat = _hbm_gather(flat_ids, weight)
    else:
        # Only the HBM path needs chunking (scalar-prefetched ids live in SMEM).
        chunks = [_hbm_gather(flat_ids[s:s + _MAX_TOKENS_PER_HBM_CALL], weight)
                  for s in range(0, n, _MAX_TOKENS_PER_HBM_CALL)]
        out_flat = jnp.concatenate(chunks, axis=0)

    return out_flat.reshape(b, t, d)


def init_embedding_weight(key, num_embeddings: int, embedding_dim: int,
                          dtype=jnp.float32) -> jax.Array:
    # Matches nn.init.trunc_normal_(mean=0, std=1, a=-3, b=3).
    w = jax.random.truncated_normal(
        key, lower=-3.0, upper=3.0,
        shape=(num_embeddings, embedding_dim), dtype=jnp.float32)
    return w.astype(dtype)


if __name__ == "__main__":
    num_embeddings = 64      # V (small -> one-hot MXU fast path)
    embedding_dim = 128      # D (lane-aligned)
    B, T = 2, 8

    key = jax.random.PRNGKey(0)
    k_w, k_ids = jax.random.split(key)

    weight = init_embedding_weight(k_w, num_embeddings, embedding_dim)
    token_ids = jax.random.randint(k_ids, (B, T), 0, num_embeddings,
                                   dtype=jnp.int32)

    ref = weight[token_ids]

    # Fast path: resident table, one-hot MXU gather.
    out = jax.block_until_ready(embedding_forward(token_ids, weight))
    assert out.shape == (B, T, embedding_dim)
    assert out.dtype == weight.dtype
    assert jnp.array_equal(out, ref)

    # Large-table path (per-row HBM DMA + single-wait drain), forced on same data.
    out_hbm = jax.block_until_ready(
        embedding_forward(token_ids, weight, force_hbm_path=True))
    assert jnp.array_equal(out_hbm, ref)

    print("KERNEL_OK")
</pallas_src>

<mosaic_0001>
module attributes {stable_mosaic.version = 11 : i64} {
  func.func @_embedding_onehot_kernel(%arg0: i32, %arg1: memref<32x1xi32, #tpu.memory_space<vmem>>, %arg2: memref<64x128xf32, #tpu.memory_space<vmem>>, %arg3: memref<32x128xf32, #tpu.memory_space<vmem>>) attributes {dimension_semantics = [#tpu.dimension_semantics<parallel>], iteration_bounds = array<i64: 1>, scalar_prefetch = 0 : i64, scratch_operands = 0 : i64, tpu.core_type = #tpu.core_type<tc>, window_params = [{transform_indices = @transform_0, window_bounds = array<i64: 32, 1>}, {pipeline_mode = #tpu.pipeline_mode<synchronous>, transform_indices = @transform_1, window_bounds = array<i64: 64, 128>}, {transform_indices = @transform_2, window_bounds = array<i64: 32, 128>}]} {
    %c0 = arith.constant 0 : index
    %c0_0 = arith.constant 0 : index
    %0 = vector.load %arg1[%c0, %c0_0] : memref<32x1xi32, #tpu.memory_space<vmem>>, vector<32x1xi32>
    %1 = tpu.iota {dimensions = array<i32: 1>} : vector<32x64xi32>
    %2 = vector.broadcast %0 : vector<32x1xi32> to vector<32x64xi32>
    %3 = arith.cmpi eq, %1, %2 : vector<32x64xi32>
    %4 = arith.extui %3 : vector<32x64xi1> to vector<32x64xi32>
    %5 = arith.sitofp %4 : vector<32x64xi32> to vector<32x64xf32>
    %c0_1 = arith.constant 0 : index
    %c0_2 = arith.constant 0 : index
    %6 = vector.load %arg2[%c0_1, %c0_2] : memref<64x128xf32, #tpu.memory_space<vmem>>, vector<64x128xf32>
    %cst = arith.constant dense<0.000000e+00> : vector<32x128xf32>
    %7 = tpu.matmul %5, %6, %cst {dimension_numbers = #tpu.dot_dimension_numbers<[1], [0], [0], [1], [0, 0, 1, 1], [], []>} : vector<32x64xf32>, vector<64x128xf32>, vector<32x128xf32> -> vector<32x128xf32>
    %c0_3 = arith.constant 0 : index
    %c0_4 = arith.constant 0 : index
    %8 = vector.load %arg3[%c0_3, %c0_4] : memref<32x128xf32, #tpu.memory_space<vmem>>, vector<32x128xf32>
    tpu.vector_store %arg3[%c0_3, %c0_4], %7 {strides = array<i32>} : memref<32x128xf32, #tpu.memory_space<vmem>>, vector<32x128xf32>,
    return
  }
  func.func @transform_0(%arg0: i32) -> (i32, i32) {
    %c0_i32 = arith.constant 0 : i32
    %c0_i32_0 = arith.constant 0 : i32
    return %arg0, %c0_i32 : i32, i32
  }
  func.func @transform_1(%arg0: i32) -> (i32, i32) {
    %c0_i32 = arith.constant 0 : i32
    %c0_i32_0 = arith.constant 0 : i32
    %c0_i32_1 = arith.constant 0 : i32
    return %c0_i32, %c0_i32_0 : i32, i32
  }
  func.func @transform_2(%arg0: i32) -> (i32, i32) {
    %c0_i32 = arith.constant 0 : i32
    %c0_i32_0 = arith.constant 0 : i32
    return %arg0, %c0_i32 : i32, i32
  }
}

</mosaic_0001>

<llo_original>
// kernel: tpu_custom_call.1
$region0: #{tpu_custom_call.1}
  #allocation0 [shape = 'u32[]', space=smem, size = 0x4, offset = 0x4, fixed_abs, tag = 'smem constant byte address 0x4 - core index']
  #allocation1 [shape = 'u32[144,128]{1,0:T(1,128)}', space=vmem, size = 0x12000, scoped, tag = 'internal scratch']
  %s0 = inlined_call_operand.vmem [shape: s32[32,1], index: 0, kind: input, shape index: {}]
  %s1 = inlined_call_operand.hbm [shape: f32[64,128], index: 1, kind: input, shape index: {}]
  %s2 = inlined_call_operand.hbm [shape: f32[32,128], index: 2, kind: output, shape index: {}]
  %s3 = sld [smem:[#allocation0]]
  $region22: #{tpu_custom_call.1} parent=0
    _
  %s5 = ssub.s32 1, %s3
  %s6 = scalar_select 0, %s5, %s3
  $region1: #{tpu_custom_call.1} parent=0
    #allocation2 [shape = 'u8[32768]{0}', space=vmem, size = 0x8000, scoped, tag = 'input window, operand 1, single buffered']
    #allocation3 [shape = 's32[1]{0}', space=sflag, size = 0x4, scoped, tag = 'scoped memory for tpu_custom_call.1']
    #allocation4 [shape = 's32[1]{0}', space=sflag, size = 0x4, scoped, tag = 'scoped memory for tpu_custom_call.1']
    #allocation5 [shape = 'u8[16384]{0}', space=vmem, size = 0x4000, scoped, tag = 'output window, operand 0, single buffered']
    %7 = vsyncpa [#allocation3], 0
    %8 = vsyncpa [#allocation4], 0
    // Predicated region
    $region2: #{tpu_custom_call.1} parent=1 // pred_check
      _
    $region3: #{tpu_custom_call.1} parent=1 // pred_check_branch
      %10 = sbr.rel (0) target = $region5
    $region4: #{tpu_custom_call.1} parent=1 // pred_region
      _
    $region5: #{tpu_custom_call.1} parent=1 // pred_fallthru
      _
    // Predicated region
    $region6: #{tpu_custom_call.1} parent=1 // pred_check
      _
    $region7: #{tpu_custom_call.1} parent=1 // pred_check_branch
      %12 = sbr.rel (0) target = $region9
    $region8: #{tpu_custom_call.1} parent=1 // pred_region
      %s14 = ssub.s32 1024, 1024
      %15 = vsyncadd [#allocation3], %s14
      %s16 = sshll.u32 [#allocation2], 4
      %s17 = int_to_ptr.vmem [resolvable:$true] %s16
      %22 = dma.hbm_to_vmem [thread:$0]  %s1, 1024, %s17, [#allocation3], 128, 128, 8
    $region9: #{tpu_custom_call.1} parent=1 // pred_fallthru
      _
    // Predicated region
    $region10: #{tpu_custom_call.1} parent=1 // pred_check
      _
    $region11: #{tpu_custom_call.1} parent=1 // pred_check_branch
      %24 = sbr.rel (0) target = $region13
    $region12: #{tpu_custom_call.1} parent=1 // pred_region
      %25 = dma.done [#allocation3], 1024
    $region13: #{tpu_custom_call.1} parent=1 // pred_fallthru
      _
    %v26 = vld [vmem:[%s0] sm:$0xff]
    %v27 = vld [vmem:[%s0 + $0x8] sm:$0xff]
    %v28 = vld [vmem:[%s0 + $0x10] sm:$0xff]
    %v29 = vld [vmem:[%s0 + $0x18] sm:$0xff]
    %v30 = vlaneseq
    %v31 = vand.u32 %v30, 127
    %32 = vset.pattern.permute.xlu0 0
    %33 = vperm.xlu0 %32, %v26
    %v34 = vpop.permute.xlu0 %33
    %35 = vset.pattern.permute.xlu0 0
    %36 = vperm.xlu0 %35, %v27
    %v37 = vpop.permute.xlu0 %36
    %38 = vset.pattern.permute.xlu0 0
    %39 = vperm.xlu0 %38, %v28
    %v40 = vpop.permute.xlu0 %39
    %41 = vset.pattern.permute.xlu0 0
    %42 = vperm.xlu0 %41, %v29
    %v43 = vpop.permute.xlu0 %42
    %vm44 = vcmp.eq.s32.totalorder %v31, %v34
    %vm45 = vcmp.eq.s32.totalorder %v31, %v37
    %vm46 = vcmp.eq.s32.totalorder %v31, %v40
    %vm47 = vcmp.eq.s32.totalorder %v31, %v43
    %v48 = vsel %vm44, 1, 0
    %v49 = vsel %vm45, 1, 0
    %v50 = vsel %vm46, 1, 0
    %v51 = vsel %vm47, 1, 0
    %v52 = vcvt.s32.f32 %v48
    %v53 = vcvt.s32.f32 %v49
    %v54 = vcvt.s32.f32 %v50
    %v55 = vcvt.s32.f32 %v51
    %v56 = vld [vmem:[#allocation2] sm:$0xff]
    %v57 = vld [vmem:[#allocation2 + $0x8] sm:$0xff]
    %v58 = vld [vmem:[#allocation2 + $0x10] sm:$0xff]
    %v59 = vld [vmem:[#allocation2 + $0x18] sm:$0xff]
    %v60 = vld [vmem:[#allocation2 + $0x20] sm:$0xff]
    %v61 = vld [vmem:[#allocation2 + $0x28] sm:$0xff]
    %v62 = vld [vmem:[#allocation2 + $0x30] sm:$0xff]
    %v63 = vld [vmem:[#allocation2 + $0x38] sm:$0xff]
    %vm64 = vcmask 523264
    %v66 = vsel %vm64, %v52, 0
    %v69 = vsel %vm64, %v53, 0
    %v72 = vsel %vm64, %v54, 0
    %v75 = vsel %vm64, %v55, 0
    %77 = vmatprep.subr.mxu0 0.0
    %78 = vmatpush1.msra.mxu0 %v56
    %79 = vmatprep.subr.mxu0 0.0
    %80 = vmatpush1.msra.mxu0 %v57
    %81 = vmatprep.subr.mxu0 0.0
    %82 = vmatpush1.msra.mxu0 %v58
    %83 = vmatprep.subr.mxu0 0.0
    %84 = vmatpush1.msra.mxu0 %v59
    %85 = vmatprep.subr.mxu0 0.0
    %86 = vmatpush1.msra.mxu0 %v60
    %87 = vmatprep.subr.mxu0 0.0
    %88 = vmatpush1.msra.mxu0 %v61
    %89 = vmatprep.subr.mxu0 0.0
    %90 = vmatpush1.msra.mxu0 %v62
    %91 = vmatprep.subr.mxu0 0.0
    %92 = vmatpush1.msra.mxu0 %v63
    %93 = vmatprep.subr.mxu0 0.0
    %94 = vmatpush1.msra.mxu0 0.0
    %95 = vmatprep.subr.mxu0 0.0
    %96 = vmatpush1.msra.mxu0 0.0
    %97 = vmatprep.subr.mxu0 0.0
    %98 = vmatpush1.msra.mxu0 0.0
    %99 = vmatprep.subr.mxu0 0.0
    %100 = vmatpush1.msra.mxu0 0.0
    %101 = vmatprep.subr.mxu0 0.0
    %102 = vmatpush1.msra.mxu0 0.0
    %103 = vmatprep.subr.mxu0 0.0
    %104 = vmatpush1.msra.mxu0 0.0
    %105 = vmatprep.subr.mxu0 0.0
    %106 = vmatpush1.msra.mxu0 0.0
    %107 = vmatprep.subr.mxu0 0.0
    %108 = vmatpush1.msra.mxu0 0.0
    %109 = vmatprep.subr.mxu0 0.0
    %110 = vmatpush1.msra.mxu0 0.0
    %111 = vmatprep.subr.mxu0 0.0
    %112 = vmatpush1.msra.mxu0 0.0
    %113 = vmatprep.subr.mxu0 0.0
    %114 = vmatpush1.msra.mxu0 0.0
    %115 = vmatprep.subr.mxu0 0.0
    %116 = vmatpush1.msra.mxu0 0.0
    %117 = vmatprep.subr.mxu0 0.0
    %118 = vmatpush1.msra.mxu0 0.0
    %119 = vmatprep.subr.mxu0 0.0
    %120 = vmatpush1.msra.mxu0 0.0
    %121 = vmatprep.subr.mxu0 0.0
    %122 = vmatpush1.msra.mxu0 0.0
    %123 = vmatprep.subr.mxu0 0.0
    %124 = vmatpush1.msra.mxu0 0.0
    %125 = vmatprep.subr.mxu0 0.0
    %126 = vmatpush1.msra.mxu0 0.0
    %127 = vmatprep.subr.mxu0 0.0
    %128 = vmatpush1.msra.mxu0 0.0
    %129 = vmatprep.subr.mxu0 0.0
    %130 = vmatpush1.msra.mxu0 0.0
    %131 = vmatprep.subr.mxu0 0.0
    %132 = vmatpush1.msra.mxu0 0.0
    %133 = vmatprep.subr.mxu0 0.0
    %134 = vmatpush1.msra.mxu0 0.0
    %135 = vmatprep.subr.mxu0 0.0
    %136 = vmatpush1.msra.mxu0 0.0
    %137 = vmatprep.subr.mxu0 0.0
    %138 = vmatpush1.msra.mxu0 0.0
    %139 = vmatprep.subr.mxu0 0.0
    %140 = vmatpush1.msra.mxu0 0.0
    %141 = vmatprep.mubr.f32.mxu0 0.0
    %142 = vmatmul.mubr.f32.gmra.mrb[0].mxu0 %v66
    %v143 = vpop.f32.mrb[0].mxu0
    %v144 = vadd.f32 0.0, %v143
    %v145 = vpop.f32.mrb[0].mxu0
    %146 = vmatprep.mubr.f32.mxu0 0.0
    %147 = vmatmul.mubr.f32.gmra.mrb[0].mxu0 %v69
    %v148 = vpop.f32.mrb[0].mxu0
    %v149 = vadd.f32 0.0, %v148
    %v150 = vpop.f32.mrb[0].mxu0
    %151 = vmatprep.mubr.f32.mxu0 0.0
    %152 = vmatmul.mubr.f32.gmra.mrb[0].mxu0 %v72
    %v153 = vpop.f32.mrb[0].mxu0
    %v154 = vadd.f32 0.0, %v153
    %v155 = vpop.f32.mrb[0].mxu0
    %156 = vmatprep.mubr.f32.mxu0 0.0
    %157 = vmatmul.mubr.f32.gmra.mrb[0].mxu0 %v75
    %v158 = vpop.f32.mrb[0].mxu0
    %v159 = vadd.f32 0.0, %v158
    %v160 = vpop.f32.mrb[0].mxu0
    %161 = vdwg.mxu0
    %162 = vst [vmem:[#allocation5] sm:$0xff] %v144
    %163 = vst [vmem:[#allocation5 + $0x8] sm:$0xff] %v149
    %164 = vst [vmem:[#allocation5 + $0x10] sm:$0xff] %v154
    %165 = vst [vmem:[#allocation5 + $0x18] sm:$0xff] %v159
    // Predicated region
    $region14: #{tpu_custom_call.1} parent=1 // pred_check
      _
    $region15: #{tpu_custom_call.1} parent=1 // pred_check_branch
      %167 = sbr.rel (0) target = $region17
    $region16: #{tpu_custom_call.1} parent=1 // pred_region
      %s169 = ssub.s32 512, 512
      %170 = vsyncadd [#allocation4], %s169
      %s171 = sshll.u32 [#allocation5], 4
      %s172 = int_to_ptr.vmem [resolvable:$true] %s171
      %177 = dma.vmem_to_hbm [thread:$0]  %s172, 512, %s2, [#allocation4], 128, 128, 8
    $region17: #{tpu_custom_call.1} parent=1 // pred_fallthru
      _
    // Predicated region
    $region18: #{tpu_custom_call.1} parent=1 // pred_check
      _
    $region19: #{tpu_custom_call.1} parent=1 // pred_check_branch
      %179 = sbr.rel (0) target = $region21
    $region20: #{tpu_custom_call.1} parent=1 // pred_region
      %180 = dma.done [#allocation4], 512
    $region21: #{tpu_custom_call.1} parent=1 // pred_fallthru
      _
    %181 = vsyncpa [#allocation3], 1
    %182 = vsyncpa [#allocation4], 1

</llo_original>
